<compile_context>
chip_gen: v5e
topology: v5e:2x2
jax: 0.10.0
libtpu: 0.0.40
codegen_flags: <defaults>
</compile_context>

<pallas_src>
import functools

import jax
import jax.numpy as jnp
from jax.experimental import pallas as pl
from jax.experimental.pallas import tpu as pltpu


def _elu(x):
    # ELU(alpha=1): x if x > 0 else exp(x) - 1  (clamp arg so the unselected
    # branch cannot overflow).
    return jnp.where(x > 0, x, jnp.exp(jnp.minimum(x, 0.0)) - 1.0)


def gated_resblock_kernel(x_ref, w1_ref, b1_ref, w2_ref, b2_ref, masks_ref,
                          o_ref, *, H, W, K, Cin):
    """One batch-block per grid step; lanes = (images x pixels) of this block.

    x_ref     : (Cin_pad, L)        input activation, f32, lane-dense
    w1_ref    : (C_pad, K*K*Cin_pad) bf16 im2col weight of conv1
    b1_ref    : (C_pad, 1)          f32 bias of conv1 (zero-padded rows)
    w2_ref    : (2*Cin, K*K*C_pad)  bf16 im2col weight of conv2
    b2_ref    : (2*Cin, 1)          f32 bias of conv2
    masks_ref : (K*K, M, L)         f32 {0,1} per-tap validity ('same' padding),
                                    pre-broadcast over channel rows
    o_ref     : (Cin, L)            output (first Cin channels only)
    """
    p = K // 2
    L = x_ref.shape[-1]

    x = x_ref[...].astype(jnp.float32)            # (Cin_pad, L)

    def im2col(a):
        """(rows, L) f32 -> (K*K*rows, L) bf16 patch, tap-major / channel-minor."""
        rows = a.shape[0]
        taps = []
        for dy in range(K):
            for dx in range(K):
                s = (dy - p) * W + (dx - p)        # static flat shift for tap
                if s == 0:
                    taps.append(a)                 # center tap: no shift/mask
                    continue
                t = dy * K + dx
                # rolled[c, i] = a[c, (i + s) mod L]; wrapped / cross-row /
                # cross-image positions are zeroed by the tap mask below
                # (jnp.where so non-finite wrapped values cannot leak).
                rolled = jnp.roll(a, shift=(-s) % L, axis=1)
                m = masks_ref[t]                   # (M, L), static index
                if rows != m.shape[0]:
                    m = m[:rows]
                taps.append(jnp.where(m > 0.0, rolled, 0.0))
        # f32 concat of 8-row slabs is tile-aligned; one cast for the MXU.
        return jnp.concatenate(taps, axis=0).astype(jnp.bfloat16)

    # ---- conv1(ELU(input)): one MXU matmul, f32 accumulate, f32 bias -------
    out1 = jnp.dot(w1_ref[...], im2col(_elu(x)),
                   preferred_element_type=jnp.float32) + b1_ref[...]

    # ---- ELU -> dropout (identity at inference) -> conv2 -------------------
    # TODO(synk): training-mode nn.Dropout(0.1) randomness is not modeled;
    # inference (identity) semantics are used.
    out2 = jnp.dot(w2_ref[...], im2col(_elu(out1)),
                   preferred_element_type=jnp.float32) + b2_ref[...]

    # ---- GLU over channels (first half * sigmoid(second half)) + residual --
    res = out2[:Cin, :] * jax.nn.sigmoid(out2[Cin:, :]) + x[:Cin, :]
    o_ref[...] = res.astype(o_ref.dtype)


def _round_up8(c):
    return ((c + 7) // 8) * 8


def gated_resblock(x_nchw, w1, b1, w2, b2, *, batch_per_step=None):
    """x: (N,Cin,H,W); w1: (C,Cin,K,K) OIHW; b1: (C,);
       w2: (2*Cin,C,K,K); b2: (2*Cin,).  Returns (N,Cin,H,W)."""
    N, Cin, H, W = x_nchw.shape
    C = w1.shape[0]
    K = w1.shape[-1]
    p = K // 2
    HW = H * W
    C2 = 2 * Cin
    assert w2.shape[0] == C2 and w2.shape[1] == C

    Cin_p = _round_up8(Cin)
    C_p = _round_up8(C)

    # Grid steps: fold the whole batch on single-TC parts (v5e/v6e); keep two
    # "parallel" steps on v7x (2 TensorCores/chip) so neither core idles.
    if batch_per_step is None:
        batch_per_step = N
        try:
            kind = jax.devices()[0].device_kind.lower()
        except Exception:
            kind = ""
        if "v7" in kind and N >= 2 and N % 2 == 0:
            batch_per_step = N // 2
    assert N % batch_per_step == 0
    NB = N // batch_per_step
    L = batch_per_step * HW                       # lanes per grid step

    # Lane-dense, channel-major activation: (Cin_pad, N*HW), image-major lanes.
    # (one transpose in the wrapper; zero channel padding for 8-row taps).
    x_cl = jnp.transpose(x_nchw.reshape(N, Cin, HW), (1, 0, 2)).reshape(Cin, N * HW)
    x_cl = jnp.pad(x_cl, ((0, Cin_p - Cin), (0, 0)))

    # im2col weights: OIHW -> (O, Kh, Kw, I) -> (O, K*K*I); channel-padded; bf16.
    w1_p = jnp.pad(w1, ((0, C_p - C), (0, Cin_p - Cin), (0, 0), (0, 0)))
    w2_p = jnp.pad(w2, ((0, 0), (0, C_p - C), (0, 0), (0, 0)))
    w1_mat = jnp.transpose(w1_p, (0, 2, 3, 1)).reshape(C_p, K * K * Cin_p)
    w2_mat = jnp.transpose(w2_p, (0, 2, 3, 1)).reshape(C2, K * K * C_p)
    w1_mat = w1_mat.astype(jnp.bfloat16)
    w2_mat = w2_mat.astype(jnp.bfloat16)
    b1_col = jnp.pad(b1, (0, C_p - C)).reshape(C_p, 1).astype(jnp.float32)
    b2_col = b2.reshape(C2, 1).astype(jnp.float32)

    # Per-tap 'same'-padding validity masks for ONE image, tiled over the
    # images of a batch block and pre-broadcast over channel rows (one table
    # serves both convs since Cin_pad == C_pad == 8 here).
    yy, xx = jnp.meshgrid(jnp.arange(H), jnp.arange(W), indexing="ij")
    mask_rows = []
    for dy in range(K):
        for dx in range(K):
            oy, ox = dy - p, dx - p
            valid = ((yy + oy >= 0) & (yy + oy < H)
                     & (xx + ox >= 0) & (xx + ox < W))
            mask_rows.append(valid.reshape(HW))
    masks_img = jnp.stack(mask_rows).astype(jnp.float32)       # (K*K, HW)
    M = max(Cin_p, C_p)
    masks = jnp.tile(masks_img, (1, batch_per_step))            # (K*K, L)
    masks = jnp.broadcast_to(masks[:, None, :], (K * K, M, L))  # (K*K, M, L)

    kernel = functools.partial(gated_resblock_kernel, H=H, W=W, K=K, Cin=Cin)

    flops = 2 * N * HW * K * K * (Cin_p * C_p + C_p * C2)
    bytes_accessed = (2 * N * Cin * HW * 4                      # x in + out
                      + w1_mat.size * 2 + w2_mat.size * 2
                      + (b1_col.size + b2_col.size + masks.size) * 4)
    cost = pl.CostEstimate(flops=int(flops),
                           transcendentals=int(N * HW * (Cin + C + Cin)),
                           bytes_accessed=int(bytes_accessed))

    out_cl = pl.pallas_call(
        kernel,
        out_shape=jax.ShapeDtypeStruct((Cin, N * HW), x_nchw.dtype),
        grid_spec=pltpu.PrefetchScalarGridSpec(
            num_scalar_prefetch=0,
            grid=(NB,),
            in_specs=[
                pl.BlockSpec((Cin_p, L), lambda i: (0, i)),
                pl.BlockSpec((C_p, K * K * Cin_p), lambda i: (0, 0)),
                pl.BlockSpec((C_p, 1), lambda i: (0, 0)),
                pl.BlockSpec((C2, K * K * C_p), lambda i: (0, 0)),
                pl.BlockSpec((C2, 1), lambda i: (0, 0)),
                pl.BlockSpec((K * K, M, L), lambda i: (0, 0, 0)),
            ],
            out_specs=pl.BlockSpec((Cin, L), lambda i: (0, i)),
        ),
        compiler_params=pltpu.CompilerParams(
            dimension_semantics=("parallel",)),
        cost_estimate=cost,
    )(x_cl, w1_mat, b1_col, w2_mat, b2_col, masks)

    return jnp.transpose(out_cl.reshape(Cin, N, HW), (1, 0, 2)).reshape(N, Cin, H, W)


# ------------------------- parameter construction ---------------------------
def weight_norm_effective(v, g):
    """v: (Cout, Cin, K, K) PyTorch weight_v; g: (Cout,).
    Returns the effective OIHW weight g * v / ||v|| (norm over in/kh/kw)."""
    norm = jnp.sqrt(jnp.sum(v * v, axis=(1, 2, 3), keepdims=True))
    return v * (g.reshape(-1, 1, 1, 1) / norm)


def reference_gated_resblock(x, w1, b1, w2, b2, *, conv_operands_bf16):
    """Pure-JAX NCHW reference.  With conv_operands_bf16=True it mirrors the
    kernel's precision policy (bf16 matmul operands, f32 accumulate/elementwise);
    with False it is the plain f32 PyTorch-semantics forward."""
    def rnd(t):
        if conv_operands_bf16:
            return t.astype(jnp.bfloat16).astype(jnp.float32)
        return t

    K = w1.shape[-1]
    p = K // 2
    cin = x.shape[1]
    dn = ("NCHW", "OIHW", "NCHW")
    pad = [(p, p), (p, p)]
    hi = jax.lax.Precision.HIGHEST

    a1 = _elu(x)
    out1 = jax.lax.conv_general_dilated(rnd(a1), rnd(w1), (1, 1), pad,
                                        dimension_numbers=dn, precision=hi)
    out1 = out1 + b1.reshape(1, -1, 1, 1)
    a2 = _elu(out1)
    out2 = jax.lax.conv_general_dilated(rnd(a2), rnd(w2), (1, 1), pad,
                                        dimension_numbers=dn, precision=hi)
    out2 = out2 + b2.reshape(1, -1, 1, 1)
    gated = out2[:, :cin] * jax.nn.sigmoid(out2[:, cin:])
    return gated + x


if __name__ == "__main__":
    # Small shapes: batch=2, in_channel=4, channel=8, spatial=16, kernel=3
    N, Cin, H, W = 2, 4, 16, 16
    C = 8
    K = 3

    key = jax.random.PRNGKey(0)
    k_x, k_v1, k_g1, k_b1, k_v2, k_g2, k_b2 = jax.random.split(key, 7)

    x = jax.random.normal(k_x, (N, Cin, H, W), jnp.float32)

    # conv1: WNConv2d(in_channel, channel, 3, padding=1)
    v1 = jax.random.normal(k_v1, (C, Cin, K, K), jnp.float32) * 0.3
    g1 = jax.random.uniform(k_g1, (C,), jnp.float32, 0.5, 1.5)
    b1 = jax.random.normal(k_b1, (C,), jnp.float32) * 0.1
    # conv2: WNConv2d(channel, 2*in_channel, 3, padding=1)
    v2 = jax.random.normal(k_v2, (2 * Cin, C, K, K), jnp.float32) * 0.3
    g2 = jax.random.uniform(k_g2, (2 * Cin,), jnp.float32, 0.5, 1.5)
    b2 = jax.random.normal(k_b2, (2 * Cin,), jnp.float32) * 0.1

    w1 = weight_norm_effective(v1, g1)   # (C, Cin, K, K)
    w2 = weight_norm_effective(v2, g2)   # (2*Cin, C, K, K)

    out = jax.block_until_ready(gated_resblock(x, w1, b1, w2, b2))
    assert out.shape == (N, Cin, H, W)

    # Tight check against a reference with the same precision policy
    # (bf16 matmul operands, f32 accumulation/elementwise).
    ref_matched = jax.block_until_ready(
        reference_gated_resblock(x, w1, b1, w2, b2, conv_operands_bf16=True))
    assert jnp.allclose(out, ref_matched, atol=1e-3, rtol=1e-3), (
        float(jnp.max(jnp.abs(out - ref_matched))))

    # Loose sanity check against the full-f32 PyTorch-semantics forward
    # (difference is only bf16 rounding of the matmul operands).
    ref_f32 = jax.block_until_ready(
        reference_gated_resblock(x, w1, b1, w2, b2, conv_operands_bf16=False))
    assert jnp.allclose(out, ref_f32, atol=1e-1, rtol=1e-1), (
        float(jnp.max(jnp.abs(out - ref_f32))))

    print("KERNEL_OK")
</pallas_src>

<mosaic_0001>
module attributes {stable_mosaic.version = 11 : i64} {
  func.func @gated_resblock_kernel(%arg0: i32, %arg1: memref<8x512xf32, #tpu.memory_space<vmem>>, %arg2: memref<8x72xbf16, #tpu.memory_space<vmem>>, %arg3: memref<8x1xf32, #tpu.memory_space<vmem>>, %arg4: memref<8x72xbf16, #tpu.memory_space<vmem>>, %arg5: memref<8x1xf32, #tpu.memory_space<vmem>>, %arg6: memref<9x8x512xf32, #tpu.memory_space<vmem>>, %arg7: memref<4x512xf32, #tpu.memory_space<vmem>>) attributes {dimension_semantics = [#tpu.dimension_semantics<parallel>], iteration_bounds = array<i64: 1>, scalar_prefetch = 0 : i64, scratch_operands = 0 : i64, tpu.core_type = #tpu.core_type<tc>, window_params = [{transform_indices = @transform_0, window_bounds = array<i64: 8, 512>}, {pipeline_mode = #tpu.pipeline_mode<synchronous>, transform_indices = @transform_1, window_bounds = array<i64: 8, 72>}, {pipeline_mode = #tpu.pipeline_mode<synchronous>, transform_indices = @transform_2, window_bounds = array<i64: 8, 1>}, {pipeline_mode = #tpu.pipeline_mode<synchronous>, transform_indices = @transform_3, window_bounds = array<i64: 8, 72>}, {pipeline_mode = #tpu.pipeline_mode<synchronous>, transform_indices = @transform_4, window_bounds = array<i64: 8, 1>}, {pipeline_mode = #tpu.pipeline_mode<synchronous>, transform_indices = @transform_5, window_bounds = array<i64: 9, 8, 512>}, {transform_indices = @transform_6, window_bounds = array<i64: 4, 512>}]} {
    %c0 = arith.constant 0 : index
    %c0_0 = arith.constant 0 : index
    %0 = vector.load %arg1[%c0, %c0_0] : memref<8x512xf32, #tpu.memory_space<vmem>>, vector<8x512xf32>
    %c0_1 = arith.constant 0 : index
    %c0_2 = arith.constant 0 : index
    %1 = vector.load %arg2[%c0_1, %c0_2] : memref<8x72xbf16, #tpu.memory_space<vmem>>, vector<8x72xbf16>
    %cst = arith.constant 0.000000e+00 : f32
    %2 = vector.broadcast %cst : f32 to vector<8x512xf32>
    %3 = arith.cmpf ogt, %0, %2 : vector<8x512xf32>
    %cst_3 = arith.constant 0.000000e+00 : f32
    %4 = vector.broadcast %cst_3 : f32 to vector<8x512xf32>
    %5 = arith.minimumf %0, %4 : vector<8x512xf32>
    %6 = math.exp %5 : vector<8x512xf32>
    %cst_4 = arith.constant 1.000000e+00 : f32
    %7 = vector.broadcast %cst_4 : f32 to vector<8x512xf32>
    %8 = arith.subf %6, %7 : vector<8x512xf32>
    %9 = arith.select %3, %0, %8 : vector<8x512xi1>, vector<8x512xf32>
    %10 = vector.extract_strided_slice %9 {offsets = [0, 495], sizes = [8, 17], strides = [1, 1]} : vector<8x512xf32> to vector<8x17xf32>
    %11 = vector.extract_strided_slice %9 {offsets = [0, 0], sizes = [8, 495], strides = [1, 1]} : vector<8x512xf32> to vector<8x495xf32>
    %12 = tpu.concatenate %10, %11 in 1 : vector<8x17xf32>, vector<8x495xf32> -> vector<8x512xf32>
    %c0_5 = arith.constant 0 : index
    %c0_6 = arith.constant 0 : index
    %c0_7 = arith.constant 0 : index
    %13 = vector.load %arg6[%c0_5, %c0_6, %c0_7] : memref<9x8x512xf32, #tpu.memory_space<vmem>>, vector<1x8x512xf32>
    %14 = vector.shape_cast %13 : vector<1x8x512xf32> to vector<8x512xf32>
    %cst_8 = arith.constant 0.000000e+00 : f32
    %15 = vector.broadcast %cst_8 : f32 to vector<8x512xf32>
    %16 = arith.cmpf ogt, %14, %15 : vector<8x512xf32>
    %cst_9 = arith.constant 0.000000e+00 : f32
    %17 = vector.broadcast %cst_9 : f32 to vector<8x512xf32>
    %18 = arith.select %16, %12, %17 : vector<8x512xi1>, vector<8x512xf32>
    %19 = vector.extract_strided_slice %9 {offsets = [0, 496], sizes = [8, 16], strides = [1, 1]} : vector<8x512xf32> to vector<8x16xf32>
    %20 = vector.extract_strided_slice %9 {offsets = [0, 0], sizes = [8, 496], strides = [1, 1]} : vector<8x512xf32> to vector<8x496xf32>
    %21 = tpu.concatenate %19, %20 in 1 : vector<8x16xf32>, vector<8x496xf32> -> vector<8x512xf32>
    %c1 = arith.constant 1 : index
    %c0_10 = arith.constant 0 : index
    %c0_11 = arith.constant 0 : index
    %22 = vector.load %arg6[%c1, %c0_10, %c0_11] : memref<9x8x512xf32, #tpu.memory_space<vmem>>, vector<1x8x512xf32>
    %23 = vector.shape_cast %22 : vector<1x8x512xf32> to vector<8x512xf32>
    %cst_12 = arith.constant 0.000000e+00 : f32
    %24 = vector.broadcast %cst_12 : f32 to vector<8x512xf32>
    %25 = arith.cmpf ogt, %23, %24 : vector<8x512xf32>
    %cst_13 = arith.constant 0.000000e+00 : f32
    %26 = vector.broadcast %cst_13 : f32 to vector<8x512xf32>
    %27 = arith.select %25, %21, %26 : vector<8x512xi1>, vector<8x512xf32>
    %28 = vector.extract_strided_slice %9 {offsets = [0, 497], sizes = [8, 15], strides = [1, 1]} : vector<8x512xf32> to vector<8x15xf32>
    %29 = vector.extract_strided_slice %9 {offsets = [0, 0], sizes = [8, 497], strides = [1, 1]} : vector<8x512xf32> to vector<8x497xf32>
    %30 = tpu.concatenate %28, %29 in 1 : vector<8x15xf32>, vector<8x497xf32> -> vector<8x512xf32>
    %c2 = arith.constant 2 : index
    %c0_14 = arith.constant 0 : index
    %c0_15 = arith.constant 0 : index
    %31 = vector.load %arg6[%c2, %c0_14, %c0_15] : memref<9x8x512xf32, #tpu.memory_space<vmem>>, vector<1x8x512xf32>
    %32 = vector.shape_cast %31 : vector<1x8x512xf32> to vector<8x512xf32>
    %cst_16 = arith.constant 0.000000e+00 : f32
    %33 = vector.broadcast %cst_16 : f32 to vector<8x512xf32>
    %34 = arith.cmpf ogt, %32, %33 : vector<8x512xf32>
    %cst_17 = arith.constant 0.000000e+00 : f32
    %35 = vector.broadcast %cst_17 : f32 to vector<8x512xf32>
    %36 = arith.select %34, %30, %35 : vector<8x512xi1>, vector<8x512xf32>
    %37 = vector.extract_strided_slice %9 {offsets = [0, 511], sizes = [8, 1], strides = [1, 1]} : vector<8x512xf32> to vector<8x1xf32>
    %38 = vector.extract_strided_slice %9 {offsets = [0, 0], sizes = [8, 511], strides = [1, 1]} : vector<8x512xf32> to vector<8x511xf32>
    %39 = tpu.concatenate %37, %38 in 1 : vector<8x1xf32>, vector<8x511xf32> -> vector<8x512xf32>
    %c3 = arith.constant 3 : index
    %c0_18 = arith.constant 0 : index
    %c0_19 = arith.constant 0 : index
    %40 = vector.load %arg6[%c3, %c0_18, %c0_19] : memref<9x8x512xf32, #tpu.memory_space<vmem>>, vector<1x8x512xf32>
    %41 = vector.shape_cast %40 : vector<1x8x512xf32> to vector<8x512xf32>
    %cst_20 = arith.constant 0.000000e+00 : f32
    %42 = vector.broadcast %cst_20 : f32 to vector<8x512xf32>
    %43 = arith.cmpf ogt, %41, %42 : vector<8x512xf32>
    %cst_21 = arith.constant 0.000000e+00 : f32
    %44 = vector.broadcast %cst_21 : f32 to vector<8x512xf32>
    %45 = arith.select %43, %39, %44 : vector<8x512xi1>, vector<8x512xf32>
    %46 = vector.extract_strided_slice %9 {offsets = [0, 1], sizes = [8, 511], strides = [1, 1]} : vector<8x512xf32> to vector<8x511xf32>
    %47 = vector.extract_strided_slice %9 {offsets = [0, 0], sizes = [8, 1], strides = [1, 1]} : vector<8x512xf32> to vector<8x1xf32>
    %48 = tpu.concatenate %46, %47 in 1 : vector<8x511xf32>, vector<8x1xf32> -> vector<8x512xf32>
    %c5 = arith.constant 5 : index
    %c0_22 = arith.constant 0 : index
    %c0_23 = arith.constant 0 : index
    %49 = vector.load %arg6[%c5, %c0_22, %c0_23] : memref<9x8x512xf32, #tpu.memory_space<vmem>>, vector<1x8x512xf32>
    %50 = vector.shape_cast %49 : vector<1x8x512xf32> to vector<8x512xf32>
    %cst_24 = arith.constant 0.000000e+00 : f32
    %51 = vector.broadcast %cst_24 : f32 to vector<8x512xf32>
    %52 = arith.cmpf ogt, %50, %51 : vector<8x512xf32>
    %cst_25 = arith.constant 0.000000e+00 : f32
    %53 = vector.broadcast %cst_25 : f32 to vector<8x512xf32>
    %54 = arith.select %52, %48, %53 : vector<8x512xi1>, vector<8x512xf32>
    %55 = vector.extract_strided_slice %9 {offsets = [0, 15], sizes = [8, 497], strides = [1, 1]} : vector<8x512xf32> to vector<8x497xf32>
    %56 = vector.extract_strided_slice %9 {offsets = [0, 0], sizes = [8, 15], strides = [1, 1]} : vector<8x512xf32> to vector<8x15xf32>
    %57 = tpu.concatenate %55, %56 in 1 : vector<8x497xf32>, vector<8x15xf32> -> vector<8x512xf32>
    %c6 = arith.constant 6 : index
    %c0_26 = arith.constant 0 : index
    %c0_27 = arith.constant 0 : index
    %58 = vector.load %arg6[%c6, %c0_26, %c0_27] : memref<9x8x512xf32, #tpu.memory_space<vmem>>, vector<1x8x512xf32>
    %59 = vector.shape_cast %58 : vector<1x8x512xf32> to vector<8x512xf32>
    %cst_28 = arith.constant 0.000000e+00 : f32
    %60 = vector.broadcast %cst_28 : f32 to vector<8x512xf32>
    %61 = arith.cmpf ogt, %59, %60 : vector<8x512xf32>
    %cst_29 = arith.constant 0.000000e+00 : f32
    %62 = vector.broadcast %cst_29 : f32 to vector<8x512xf32>
    %63 = arith.select %61, %57, %62 : vector<8x512xi1>, vector<8x512xf32>
    %64 = vector.extract_strided_slice %9 {offsets = [0, 16], sizes = [8, 496], strides = [1, 1]} : vector<8x512xf32> to vector<8x496xf32>
    %65 = vector.extract_strided_slice %9 {offsets = [0, 0], sizes = [8, 16], strides = [1, 1]} : vector<8x512xf32> to vector<8x16xf32>
    %66 = tpu.concatenate %64, %65 in 1 : vector<8x496xf32>, vector<8x16xf32> -> vector<8x512xf32>
    %c7 = arith.constant 7 : index
    %c0_30 = arith.constant 0 : index
    %c0_31 = arith.constant 0 : index
    %67 = vector.load %arg6[%c7, %c0_30, %c0_31] : memref<9x8x512xf32, #tpu.memory_space<vmem>>, vector<1x8x512xf32>
    %68 = vector.shape_cast %67 : vector<1x8x512xf32> to vector<8x512xf32>
    %cst_32 = arith.constant 0.000000e+00 : f32
    %69 = vector.broadcast %cst_32 : f32 to vector<8x512xf32>
    %70 = arith.cmpf ogt, %68, %69 : vector<8x512xf32>
    %cst_33 = arith.constant 0.000000e+00 : f32
    %71 = vector.broadcast %cst_33 : f32 to vector<8x512xf32>
    %72 = arith.select %70, %66, %71 : vector<8x512xi1>, vector<8x512xf32>
    %73 = vector.extract_strided_slice %9 {offsets = [0, 17], sizes = [8, 495], strides = [1, 1]} : vector<8x512xf32> to vector<8x495xf32>
    %74 = vector.extract_strided_slice %9 {offsets = [0, 0], sizes = [8, 17], strides = [1, 1]} : vector<8x512xf32> to vector<8x17xf32>
    %75 = tpu.concatenate %73, %74 in 1 : vector<8x495xf32>, vector<8x17xf32> -> vector<8x512xf32>
    %c8 = arith.constant 8 : index
    %c0_34 = arith.constant 0 : index
    %c0_35 = arith.constant 0 : index
    %76 = vector.load %arg6[%c8, %c0_34, %c0_35] : memref<9x8x512xf32, #tpu.memory_space<vmem>>, vector<1x8x512xf32>
    %77 = vector.shape_cast %76 : vector<1x8x512xf32> to vector<8x512xf32>
    %cst_36 = arith.constant 0.000000e+00 : f32
    %78 = vector.broadcast %cst_36 : f32 to vector<8x512xf32>
    %79 = arith.cmpf ogt, %77, %78 : vector<8x512xf32>
    %cst_37 = arith.constant 0.000000e+00 : f32
    %80 = vector.broadcast %cst_37 : f32 to vector<8x512xf32>
    %81 = arith.select %79, %75, %80 : vector<8x512xi1>, vector<8x512xf32>
    %82 = tpu.concatenate %18, %27, %36, %45, %9, %54, %63, %72, %81 in 0 : vector<8x512xf32>, vector<8x512xf32>, vector<8x512xf32>, vector<8x512xf32>, vector<8x512xf32>, vector<8x512xf32>, vector<8x512xf32>, vector<8x512xf32>, vector<8x512xf32> -> vector<72x512xf32>
    %83 = arith.truncf %82 : vector<72x512xf32> to vector<72x512xbf16>
    %cst_38 = arith.constant dense<0.000000e+00> : vector<8x512xf32>
    %84 = tpu.matmul %1, %83, %cst_38 {dimension_numbers = #tpu.dot_dimension_numbers<[1], [0], [0], [1], [0, 0, 1, 1], [], []>} : vector<8x72xbf16>, vector<72x512xbf16>, vector<8x512xf32> -> vector<8x512xf32>
    %c0_39 = arith.constant 0 : index
    %c0_40 = arith.constant 0 : index
    %85 = vector.load %arg3[%c0_39, %c0_40] : memref<8x1xf32, #tpu.memory_space<vmem>>, vector<8x1xf32>
    %86 = vector.broadcast %85 : vector<8x1xf32> to vector<8x512xf32>
    %87 = arith.addf %84, %86 : vector<8x512xf32>
    %c0_41 = arith.constant 0 : index
    %c0_42 = arith.constant 0 : index
    %88 = vector.load %arg4[%c0_41, %c0_42] : memref<8x72xbf16, #tpu.memory_space<vmem>>, vector<8x72xbf16>
    %cst_43 = arith.constant 0.000000e+00 : f32
    %89 = vector.broadcast %cst_43 : f32 to vector<8x512xf32>
    %90 = arith.cmpf ogt, %87, %89 : vector<8x512xf32>
    %cst_44 = arith.constant 0.000000e+00 : f32
    %91 = vector.broadcast %cst_44 : f32 to vector<8x512xf32>
    %92 = arith.minimumf %87, %91 : vector<8x512xf32>
    %93 = math.exp %92 : vector<8x512xf32>
    %cst_45 = arith.constant 1.000000e+00 : f32
    %94 = vector.broadcast %cst_45 : f32 to vector<8x512xf32>
    %95 = arith.subf %93, %94 : vector<8x512xf32>
    %96 = arith.select %90, %87, %95 : vector<8x512xi1>, vector<8x512xf32>
    %97 = vector.extract_strided_slice %96 {offsets = [0, 495], sizes = [8, 17], strides = [1, 1]} : vector<8x512xf32> to vector<8x17xf32>
    %98 = vector.extract_strided_slice %96 {offsets = [0, 0], sizes = [8, 495], strides = [1, 1]} : vector<8x512xf32> to vector<8x495xf32>
    %99 = tpu.concatenate %97, %98 in 1 : vector<8x17xf32>, vector<8x495xf32> -> vector<8x512xf32>
    %c0_46 = arith.constant 0 : index
    %c0_47 = arith.constant 0 : index
    %c0_48 = arith.constant 0 : index
    %100 = vector.load %arg6[%c0_46, %c0_47, %c0_48] : memref<9x8x512xf32, #tpu.memory_space<vmem>>, vector<1x8x512xf32>
    %101 = vector.shape_cast %100 : vector<1x8x512xf32> to vector<8x512xf32>
    %cst_49 = arith.constant 0.000000e+00 : f32
    %102 = vector.broadcast %cst_49 : f32 to vector<8x512xf32>
    %103 = arith.cmpf ogt, %101, %102 : vector<8x512xf32>
    %cst_50 = arith.constant 0.000000e+00 : f32
    %104 = vector.broadcast %cst_50 : f32 to vector<8x512xf32>
    %105 = arith.select %103, %99, %104 : vector<8x512xi1>, vector<8x512xf32>
    %106 = vector.extract_strided_slice %96 {offsets = [0, 496], sizes = [8, 16], strides = [1, 1]} : vector<8x512xf32> to vector<8x16xf32>
    %107 = vector.extract_strided_slice %96 {offsets = [0, 0], sizes = [8, 496], strides = [1, 1]} : vector<8x512xf32> to vector<8x496xf32>
    %108 = tpu.concatenate %106, %107 in 1 : vector<8x16xf32>, vector<8x496xf32> -> vector<8x512xf32>
    %c1_51 = arith.constant 1 : index
    %c0_52 = arith.constant 0 : index
    %c0_53 = arith.constant 0 : index
    %109 = vector.load %arg6[%c1_51, %c0_52, %c0_53] : memref<9x8x512xf32, #tpu.memory_space<vmem>>, vector<1x8x512xf32>
    %110 = vector.shape_cast %109 : vector<1x8x512xf32> to vector<8x512xf32>
    %cst_54 = arith.constant 0.000000e+00 : f32
    %111 = vector.broadcast %cst_54 : f32 to vector<8x512xf32>
    %112 = arith.cmpf ogt, %110, %111 : vector<8x512xf32>
    %cst_55 = arith.constant 0.000000e+00 : f32
    %113 = vector.broadcast %cst_55 : f32 to vector<8x512xf32>
    %114 = arith.select %112, %108, %113 : vector<8x512xi1>, vector<8x512xf32>
    %115 = vector.extract_strided_slice %96 {offsets = [0, 497], sizes = [8, 15], strides = [1, 1]} : vector<8x512xf32> to vector<8x15xf32>
    %116 = vector.extract_strided_slice %96 {offsets = [0, 0], sizes = [8, 497], strides = [1, 1]} : vector<8x512xf32> to vector<8x497xf32>
    %117 = tpu.concatenate %115, %116 in 1 : vector<8x15xf32>, vector<8x497xf32> -> vector<8x512xf32>
    %c2_56 = arith.constant 2 : index
    %c0_57 = arith.constant 0 : index
    %c0_58 = arith.constant 0 : index
    %118 = vector.load %arg6[%c2_56, %c0_57, %c0_58] : memref<9x8x512xf32, #tpu.memory_space<vmem>>, vector<1x8x512xf32>
    %119 = vector.shape_cast %118 : vector<1x8x512xf32> to vector<8x512xf32>
    %cst_59 = arith.constant 0.000000e+00 : f32
    %120 = vector.broadcast %cst_59 : f32 to vector<8x512xf32>
    %121 = arith.cmpf ogt, %119, %120 : vector<8x512xf32>
    %cst_60 = arith.constant 0.000000e+00 : f32
    %122 = vector.broadcast %cst_60 : f32 to vector<8x512xf32>
    %123 = arith.select %121, %117, %122 : vector<8x512xi1>, vector<8x512xf32>
    %124 = vector.extract_strided_slice %96 {offsets = [0, 511], sizes = [8, 1], strides = [1, 1]} : vector<8x512xf32> to vector<8x1xf32>
    %125 = vector.extract_strided_slice %96 {offsets = [0, 0], sizes = [8, 511], strides = [1, 1]} : vector<8x512xf32> to vector<8x511xf32>
    %126 = tpu.concatenate %124, %125 in 1 : vector<8x1xf32>, vector<8x511xf32> -> vector<8x512xf32>
    %c3_61 = arith.constant 3 : index
    %c0_62 = arith.constant 0 : index
    %c0_63 = arith.constant 0 : index
    %127 = vector.load %arg6[%c3_61, %c0_62, %c0_63] : memref<9x8x512xf32, #tpu.memory_space<vmem>>, vector<1x8x512xf32>
    %128 = vector.shape_cast %127 : vector<1x8x512xf32> to vector<8x512xf32>
    %cst_64 = arith.constant 0.000000e+00 : f32
    %129 = vector.broadcast %cst_64 : f32 to vector<8x512xf32>
    %130 = arith.cmpf ogt, %128, %129 : vector<8x512xf32>
    %cst_65 = arith.constant 0.000000e+00 : f32
    %131 = vector.broadcast %cst_65 : f32 to vector<8x512xf32>
    %132 = arith.select %130, %126, %131 : vector<8x512xi1>, vector<8x512xf32>
    %133 = vector.extract_strided_slice %96 {offsets = [0, 1], sizes = [8, 511], strides = [1, 1]} : vector<8x512xf32> to vector<8x511xf32>
    %134 = vector.extract_strided_slice %96 {offsets = [0, 0], sizes = [8, 1], strides = [1, 1]} : vector<8x512xf32> to vector<8x1xf32>
    %135 = tpu.concatenate %133, %134 in 1 : vector<8x511xf32>, vector<8x1xf32> -> vector<8x512xf32>
    %c5_66 = arith.constant 5 : index
    %c0_67 = arith.constant 0 : index
    %c0_68 = arith.constant 0 : index
    %136 = vector.load %arg6[%c5_66, %c0_67, %c0_68] : memref<9x8x512xf32, #tpu.memory_space<vmem>>, vector<1x8x512xf32>
    %137 = vector.shape_cast %136 : vector<1x8x512xf32> to vector<8x512xf32>
    %cst_69 = arith.constant 0.000000e+00 : f32
    %138 = vector.broadcast %cst_69 : f32 to vector<8x512xf32>
    %139 = arith.cmpf ogt, %137, %138 : vector<8x512xf32>
    %cst_70 = arith.constant 0.000000e+00 : f32
    %140 = vector.broadcast %cst_70 : f32 to vector<8x512xf32>
    %141 = arith.select %139, %135, %140 : vector<8x512xi1>, vector<8x512xf32>
    %142 = vector.extract_strided_slice %96 {offsets = [0, 15], sizes = [8, 497], strides = [1, 1]} : vector<8x512xf32> to vector<8x497xf32>
    %143 = vector.extract_strided_slice %96 {offsets = [0, 0], sizes = [8, 15], strides = [1, 1]} : vector<8x512xf32> to vector<8x15xf32>
    %144 = tpu.concatenate %142, %143 in 1 : vector<8x497xf32>, vector<8x15xf32> -> vector<8x512xf32>
    %c6_71 = arith.constant 6 : index
    %c0_72 = arith.constant 0 : index
    %c0_73 = arith.constant 0 : index
    %145 = vector.load %arg6[%c6_71, %c0_72, %c0_73] : memref<9x8x512xf32, #tpu.memory_space<vmem>>, vector<1x8x512xf32>
    %146 = vector.shape_cast %145 : vector<1x8x512xf32> to vector<8x512xf32>
    %cst_74 = arith.constant 0.000000e+00 : f32
    %147 = vector.broadcast %cst_74 : f32 to vector<8x512xf32>
    %148 = arith.cmpf ogt, %146, %147 : vector<8x512xf32>
    %cst_75 = arith.constant 0.000000e+00 : f32
    %149 = vector.broadcast %cst_75 : f32 to vector<8x512xf32>
    %150 = arith.select %148, %144, %149 : vector<8x512xi1>, vector<8x512xf32>
    %151 = vector.extract_strided_slice %96 {offsets = [0, 16], sizes = [8, 496], strides = [1, 1]} : vector<8x512xf32> to vector<8x496xf32>
    %152 = vector.extract_strided_slice %96 {offsets = [0, 0], sizes = [8, 16], strides = [1, 1]} : vector<8x512xf32> to vector<8x16xf32>
    %153 = tpu.concatenate %151, %152 in 1 : vector<8x496xf32>, vector<8x16xf32> -> vector<8x512xf32>
    %c7_76 = arith.constant 7 : index
    %c0_77 = arith.constant 0 : index
    %c0_78 = arith.constant 0 : index
    %154 = vector.load %arg6[%c7_76, %c0_77, %c0_78] : memref<9x8x512xf32, #tpu.memory_space<vmem>>, vector<1x8x512xf32>
    %155 = vector.shape_cast %154 : vector<1x8x512xf32> to vector<8x512xf32>
    %cst_79 = arith.constant 0.000000e+00 : f32
    %156 = vector.broadcast %cst_79 : f32 to vector<8x512xf32>
    %157 = arith.cmpf ogt, %155, %156 : vector<8x512xf32>
    %cst_80 = arith.constant 0.000000e+00 : f32
    %158 = vector.broadcast %cst_80 : f32 to vector<8x512xf32>
    %159 = arith.select %157, %153, %158 : vector<8x512xi1>, vector<8x512xf32>
    %160 = vector.extract_strided_slice %96 {offsets = [0, 17], sizes = [8, 495], strides = [1, 1]} : vector<8x512xf32> to vector<8x495xf32>
    %161 = vector.extract_strided_slice %96 {offsets = [0, 0], sizes = [8, 17], strides = [1, 1]} : vector<8x512xf32> to vector<8x17xf32>
    %162 = tpu.concatenate %160, %161 in 1 : vector<8x495xf32>, vector<8x17xf32> -> vector<8x512xf32>
    %c8_81 = arith.constant 8 : index
    %c0_82 = arith.constant 0 : index
    %c0_83 = arith.constant 0 : index
    %163 = vector.load %arg6[%c8_81, %c0_82, %c0_83] : memref<9x8x512xf32, #tpu.memory_space<vmem>>, vector<1x8x512xf32>
    %164 = vector.shape_cast %163 : vector<1x8x512xf32> to vector<8x512xf32>
    %cst_84 = arith.constant 0.000000e+00 : f32
    %165 = vector.broadcast %cst_84 : f32 to vector<8x512xf32>
    %166 = arith.cmpf ogt, %164, %165 : vector<8x512xf32>
    %cst_85 = arith.constant 0.000000e+00 : f32
    %167 = vector.broadcast %cst_85 : f32 to vector<8x512xf32>
    %168 = arith.select %166, %162, %167 : vector<8x512xi1>, vector<8x512xf32>
    %169 = tpu.concatenate %105, %114, %123, %132, %96, %141, %150, %159, %168 in 0 : vector<8x512xf32>, vector<8x512xf32>, vector<8x512xf32>, vector<8x512xf32>, vector<8x512xf32>, vector<8x512xf32>, vector<8x512xf32>, vector<8x512xf32>, vector<8x512xf32> -> vector<72x512xf32>
    %170 = arith.truncf %169 : vector<72x512xf32> to vector<72x512xbf16>
    %cst_86 = arith.constant dense<0.000000e+00> : vector<8x512xf32>
    %171 = tpu.matmul %88, %170, %cst_86 {dimension_numbers = #tpu.dot_dimension_numbers<[1], [0], [0], [1], [0, 0, 1, 1], [], []>} : vector<8x72xbf16>, vector<72x512xbf16>, vector<8x512xf32> -> vector<8x512xf32>
    %c0_87 = arith.constant 0 : index
    %c0_88 = arith.constant 0 : index
    %172 = vector.load %arg5[%c0_87, %c0_88] : memref<8x1xf32, #tpu.memory_space<vmem>>, vector<8x1xf32>
    %173 = vector.broadcast %172 : vector<8x1xf32> to vector<8x512xf32>
    %174 = arith.addf %171, %173 : vector<8x512xf32>
    %175 = vector.extract_strided_slice %174 {offsets = [0, 0], sizes = [4, 512], strides = [1, 1]} : vector<8x512xf32> to vector<4x512xf32>
    %176 = vector.extract_strided_slice %174 {offsets = [4, 0], sizes = [4, 512], strides = [1, 1]} : vector<8x512xf32> to vector<4x512xf32>
    %177 = arith.negf %176 : vector<4x512xf32>
    %178 = math.exp %177 : vector<4x512xf32>
    %cst_89 = arith.constant 1.000000e+00 : f32
    %179 = vector.broadcast %cst_89 : f32 to vector<4x512xf32>
    %180 = arith.addf %179, %178 : vector<4x512xf32>
    %181 = arith.divf %179, %180 : vector<4x512xf32>
    %182 = arith.mulf %175, %181 : vector<4x512xf32>
    %183 = vector.extract_strided_slice %0 {offsets = [0, 0], sizes = [4, 512], strides = [1, 1]} : vector<8x512xf32> to vector<4x512xf32>
    %184 = arith.addf %182, %183 : vector<4x512xf32>
    %c0_90 = arith.constant 0 : index
    %c0_91 = arith.constant 0 : index
    %185 = vector.load %arg7[%c0_90, %c0_91] : memref<4x512xf32, #tpu.memory_space<vmem>>, vector<4x512xf32>
    tpu.vector_store %arg7[%c0_90, %c0_91], %184 {strides = array<i32>} : memref<4x512xf32, #tpu.memory_space<vmem>>, vector<4x512xf32>,
    return
  }
  func.func @transform_0(%arg0: i32) -> (i32, i32) {
    %c0_i32 = arith.constant 0 : i32
    %c0_i32_0 = arith.constant 0 : i32
    return %c0_i32, %arg0 : i32, i32
  }
  func.func @transform_1(%arg0: i32) -> (i32, i32) {
    %c0_i32 = arith.constant 0 : i32
    %c0_i32_0 = arith.constant 0 : i32
    %c0_i32_1 = arith.constant 0 : i32
    return %c0_i32, %c0_i32_0 : i32, i32
  }
  func.func @transform_2(%arg0: i32) -> (i32, i32) {
    %c0_i32 = arith.constant 0 : i32
    %c0_i32_0 = arith.constant 0 : i32
    %c0_i32_1 = arith.constant 0 : i32
    return %c0_i32, %c0_i32_0 : i32, i32
  }
  func.func @transform_3(%arg0: i32) -> (i32, i32) {
    %c0_i32 = arith.constant 0 : i32
    %c0_i32_0 = arith.constant 0 : i32
    %c0_i32_1 = arith.constant 0 : i32
    return %c0_i32, %c0_i32_0 : i32, i32
  }
  func.func @transform_4(%arg0: i32) -> (i32, i32) {
    %c0_i32 = arith.constant 0 : i32
    %c0_i32_0 = arith.constant 0 : i32
    %c0_i32_1 = arith.constant 0 : i32
    return %c0_i32, %c0_i32_0 : i32, i32
  }
  func.func @transform_5(%arg0: i32) -> (i32, i32, i32) {
    %c0_i32 = arith.constant 0 : i32
    %c0_i32_0 = arith.constant 0 : i32
    %c0_i32_1 = arith.constant 0 : i32
    %c0_i32_2 = arith.constant 0 : i32
    return %c0_i32, %c0_i32_0, %c0_i32_1 : i32, i32, i32
  }
  func.func @transform_6(%arg0: i32) -> (i32, i32) {
    %c0_i32 = arith.constant 0 : i32
    %c0_i32_0 = arith.constant 0 : i32
    return %c0_i32, %arg0 : i32, i32
  }
}

</mosaic_0001>

<llo_original>
// kernel: tpu_custom_call.1
$region0: #{tpu_custom_call.1}
  #allocation0 [shape = 'u32[]', space=smem, size = 0x4, offset = 0x4, fixed_abs, tag = 'smem constant byte address 0x4 - core index']
  #allocation1 [shape = 'u32[72,128]{1,0:T(1,128)}', space=vmem, size = 0x9000, scoped, tag = 'internal scratch']
  %s0 = inlined_call_operand.hbm [shape: f32[8,512], index: 0, kind: input, shape index: {}]
  %s1 = inlined_call_operand.vmem [shape: bf16[8,72], index: 1, kind: input, shape index: {}]
  %s2 = inlined_call_operand.vmem [shape: f32[8,1], index: 2, kind: input, shape index: {}]
  %s3 = inlined_call_operand.vmem [shape: bf16[8,72], index: 3, kind: input, shape index: {}]
  %s4 = inlined_call_operand.vmem [shape: f32[8,1], index: 4, kind: input, shape index: {}]
  %s5 = inlined_call_operand.hbm [shape: f32[9,8,512], index: 5, kind: input, shape index: {}]
  %s6 = inlined_call_operand.hbm [shape: f32[4,512], index: 6, kind: output, shape index: {}]
  %s7 = sld [smem:[#allocation0]]
  $region42: #{tpu_custom_call.1} parent=0
    _
  %s9 = ssub.s32 1, %s7
  %s10 = scalar_select 0, %s9, %s7
  $region1: #{tpu_custom_call.1} parent=0
    #allocation2 [shape = 'u8[16384]{0}', space=vmem, size = 0x4000, scoped, tag = 'input window, operand 0, single buffered']
    #allocation3 [shape = 's32[1]{0}', space=sflag, size = 0x4, scoped, tag = 'scoped memory for tpu_custom_call.1']
    #allocation4 [shape = 's32[1]{0}', space=sflag, size = 0x4, scoped, tag = 'scoped memory for tpu_custom_call.1']
    #allocation5 [shape = 'u8[147456]{0}', space=vmem, size = 0x24000, scoped, tag = 'input window, operand 5, single buffered']
    #allocation6 [shape = 's32[1]{0}', space=sflag, size = 0x4, scoped, tag = 'scoped memory for tpu_custom_call.1']
    #allocation7 [shape = 'u8[8192]{0}', space=vmem, size = 0x2000, scoped, tag = 'output window, operand 0, single buffered']
    %11 = vsyncpa [#allocation3], 0
    %12 = vsyncpa [#allocation6], 0
    %13 = vsyncpa [#allocation4], 0
    // Predicated region
    $region2: #{tpu_custom_call.1} parent=1 // pred_check
      _
    $region3: #{tpu_custom_call.1} parent=1 // pred_check_branch
      %15 = sbr.rel (0) target = $region5
    $region4: #{tpu_custom_call.1} parent=1 // pred_region
      %17 = vsyncadd [#allocation3], 0
      %s19 = sshll.u32 %s0, 4
      %s20 = int_to_ptr.hbm [resolvable:$true] %s19
      %s21 = sshll.u32 [#allocation2], 4
      %s22 = int_to_ptr.vmem [resolvable:$true] %s21
      %24 = dma.hbm_to_vmem [thread:$0]  %s20, 512, %s22, [#allocation3]
    $region5: #{tpu_custom_call.1} parent=1 // pred_fallthru
      _
    // Predicated region
    $region6: #{tpu_custom_call.1} parent=1 // pred_check
      _
    $region7: #{tpu_custom_call.1} parent=1 // pred_check_branch
      %26 = sbr.rel (0) target = $region9
    $region8: #{tpu_custom_call.1} parent=1 // pred_region
      _
    $region9: #{tpu_custom_call.1} parent=1 // pred_fallthru
      _
    // Predicated region
    $region10: #{tpu_custom_call.1} parent=1 // pred_check
      _
    $region11: #{tpu_custom_call.1} parent=1 // pred_check_branch
      %28 = sbr.rel (0) target = $region13
    $region12: #{tpu_custom_call.1} parent=1 // pred_region
      _
    $region13: #{tpu_custom_call.1} parent=1 // pred_fallthru
      _
    // Predicated region
    $region14: #{tpu_custom_call.1} parent=1 // pred_check
      _
    $region15: #{tpu_custom_call.1} parent=1 // pred_check_branch
      %30 = sbr.rel (0) target = $region17
    $region16: #{tpu_custom_call.1} parent=1 // pred_region
      _
    $region17: #{tpu_custom_call.1} parent=1 // pred_fallthru
      _
    // Predicated region
    $region18: #{tpu_custom_call.1} parent=1 // pred_check
      _
    $region19: #{tpu_custom_call.1} parent=1 // pred_check_branch
      %32 = sbr.rel (0) target = $region21
    $region20: #{tpu_custom_call.1} parent=1 // pred_region
      _
    $region21: #{tpu_custom_call.1} parent=1 // pred_fallthru
      _
    // Predicated region
    $region22: #{tpu_custom_call.1} parent=1 // pred_check
      _
    $region23: #{tpu_custom_call.1} parent=1 // pred_check_branch
      %34 = sbr.rel (0) target = $region25
    $region24: #{tpu_custom_call.1} parent=1 // pred_region
      %36 = vsyncadd [#allocation6], 0
      %s37 = sshll.u32 %s5, 4
      %s38 = int_to_ptr.hbm [resolvable:$true] %s37
      %s39 = sshll.u32 [#allocation5], 4
      %s40 = int_to_ptr.vmem [resolvable:$true] %s39
      %45 = dma.hbm_to_vmem [thread:$0]  %s38, 4608, %s40, [#allocation6], 512, 512, 32
    $region25: #{tpu_custom_call.1} parent=1 // pred_fallthru
      _
    // Predicated region
    $region26: #{tpu_custom_call.1} parent=1 // pred_check
      _
    $region27: #{tpu_custom_call.1} parent=1 // pred_check_branch
      %47 = sbr.rel (0) target = $region29
    $region28: #{tpu_custom_call.1} parent=1 // pred_region
      %49 = dma.done [#allocation3], 512
    $region29: #{tpu_custom_call.1} parent=1 // pred_fallthru
      _
    // Predicated region
    $region30: #{tpu_custom_call.1} parent=1 // pred_check
      _
    $region31: #{tpu_custom_call.1} parent=1 // pred_check_branch
      %51 = sbr.rel (0) target = $region33
    $region32: #{tpu_custom_call.1} parent=1 // pred_region
      %53 = dma.done [#allocation6], 4608
    $region33: #{tpu_custom_call.1} parent=1 // pred_fallthru
      _
    %v55 = vld [vmem:[#allocation2] sm:$0xff]
    %v56 = vld [vmem:[#allocation2 + $0x8] sm:$0xff]
    %v57 = vld [vmem:[#allocation2 + $0x10] sm:$0xff]
    %v58 = vld [vmem:[#allocation2 + $0x18] sm:$0xff]
    %v59 = vld [vmem:[%s1] sm:$0xf]
    %vm60 = vcmp.gt.f32.partialorder %v55, 0.0
    %vm61 = vcmp.gt.f32.partialorder %v56, 0.0
    %vm62 = vcmp.gt.f32.partialorder %v57, 0.0
    %vm63 = vcmp.gt.f32.partialorder %v58, 0.0
    %v64 = vmin.f32 %v55, 0.0
    %v65 = vmin.f32 %v56, 0.0
    %v66 = vmin.f32 %v57, 0.0
    %v67 = vmin.f32 %v58, 0.0
    %v68 = vmul.f32 %v64, 1.442695
    %v69 = vpow.pop %v68
    %v70 = vmul.f32 %v65, 1.442695
    %v71 = vpow.pop %v70
    %v72 = vmul.f32 %v66, 1.442695
    %v73 = vpow.pop %v72
    %v74 = vmul.f32 %v67, 1.442695
    %v75 = vpow.pop %v74
    %v76 = vsub.f32 %v69, 1.0
    %v77 = vsub.f32 %v71, 1.0
    %v78 = vsub.f32 %v73, 1.0
    %v79 = vsub.f32 %v75, 1.0
    %v80 = vsel %vm60, %v55, %v76
    %v81 = vsel %vm61, %v56, %v77
    %v82 = vsel %vm62, %v57, %v78
    %v83 = vsel %vm63, %v58, %v79
    %85 = vrot.lane.b32.xlu0 %v83, 17
    %v86 = vpop.permute.xlu0 %85
    %91 = vrot.lane.b32.xlu0 %v80, 17
    %v92 = vpop.permute.xlu0 %91
    %93 = vrot.lane.b32.xlu0 %v81, 17
    %v94 = vpop.permute.xlu0 %93
    %95 = vrot.lane.b32.xlu0 %v82, 17
    %v96 = vpop.permute.xlu0 %95
    %vm97 = vcmask 138240
    %v98 = vsel %vm97, %v92, %v94
    %v99 = vsel %vm97, %v94, %v96
    %v100 = vsel %vm97, %v96, %v86
    %v105 = vsel %vm97, %v86, %v92
    %v106 = vld [vmem:[#allocation5] sm:$0xff]
    %v107 = vld [vmem:[#allocation5 + $0x8] sm:$0xff]
    %v108 = vld [vmem:[#allocation5 + $0x10] sm:$0xff]
    %v109 = vld [vmem:[#allocation5 + $0x18] sm:$0xff]
    %vm110 = vcmp.gt.f32.partialorder %v106, 0.0
    %vm111 = vcmp.gt.f32.partialorder %v107, 0.0
    %vm112 = vcmp.gt.f32.partialorder %v108, 0.0
    %vm113 = vcmp.gt.f32.partialorder %v109, 0.0
    %v114 = vsel %vm110, %v105, 0.0
    %v115 = vsel %vm111, %v98, 0.0
    %v116 = vsel %vm112, %v99, 0.0
    %v117 = vsel %vm113, %v100, 0.0
    %118 = vrot.lane.b32.xlu0 %v83, 16
    %v119 = vpop.permute.xlu0 %118
    %121 = vrot.lane.b32.xlu0 %v80, 16
    %v122 = vpop.permute.xlu0 %121
    %123 = vrot.lane.b32.xlu0 %v81, 16
    %v124 = vpop.permute.xlu0 %123
    %125 = vrot.lane.b32.xlu0 %v82, 16
    %v126 = vpop.permute.xlu0 %125
    %vm127 = vcmask 130048
    %v128 = vsel %vm127, %v122, %v124
    %v129 = vsel %vm127, %v124, %v126
    %v130 = vsel %vm127, %v126, %v119
    %v135 = vsel %vm127, %v119, %v122
    %s136 = scalar_lea.vmem [#allocation5], 32
    %v137 = vld [vmem:[%s136] sm:$0xff]
    %v138 = vld [vmem:[%s136 + $0x8] sm:$0xff]
    %v139 = vld [vmem:[%s136 + $0x10] sm:$0xff]
    %v140 = vld [vmem:[%s136 + $0x18] sm:$0xff]
    %vm141 = vcmp.gt.f32.partialorder %v137, 0.0
    %vm142 = vcmp.gt.f32.partialorder %v138, 0.0
    %vm143 = vcmp.gt.f32.partialorder %v139, 0.0
    %vm144 = vcmp.gt.f32.partialorder %v140, 0.0
    %v145 = vsel %vm141, %v135, 0.0
    %v146 = vsel %vm142, %v128, 0.0
    %v147 = vsel %vm143, %v129, 0.0
    %v148 = vsel %vm144, %v130, 0.0
    %149 = vrot.lane.b32.xlu0 %v83, 15
    %v150 = vpop.permute.xlu0 %149
    %152 = vrot.lane.b32.xlu0 %v80, 15
    %v153 = vpop.permute.xlu0 %152
    %154 = vrot.lane.b32.xlu0 %v81, 15
    %v155 = vpop.permute.xlu0 %154
    %156 = vrot.lane.b32.xlu0 %v82, 15
    %v157 = vpop.permute.xlu0 %156
    %vm158 = vcmask 121856
    %v159 = vsel %vm158, %v153, %v155
    %v160 = vsel %vm158, %v155, %v157
    %v161 = vsel %vm158, %v157, %v150
    %v166 = vsel %vm158, %v150, %v153
    %s167 = scalar_lea.vmem [#allocation5], 64
    %v168 = vld [vmem:[%s167] sm:$0xff]
    %v169 = vld [vmem:[%s167 + $0x8] sm:$0xff]
    %v170 = vld [vmem:[%s167 + $0x10] sm:$0xff]
    %v171 = vld [vmem:[%s167 + $0x18] sm:$0xff]
    %vm172 = vcmp.gt.f32.partialorder %v168, 0.0
    %vm173 = vcmp.gt.f32.partialorder %v169, 0.0
    %vm174 = vcmp.gt.f32.partialorder %v170, 0.0
    %vm175 = vcmp.gt.f32.partialorder %v171, 0.0
    %v176 = vsel %vm172, %v166, 0.0
    %v177 = vsel %vm173, %v159, 0.0
    %v178 = vsel %vm174, %v160, 0.0
    %v179 = vsel %vm175, %v161, 0.0
    %180 = vrot.lane.b32.xlu0 %v83, 1
    %v181 = vpop.permute.xlu0 %180
    %183 = vrot.lane.b32.xlu0 %v80, 1
    %v184 = vpop.permute.xlu0 %183
    %185 = vrot.lane.b32.xlu0 %v81, 1
    %v186 = vpop.permute.xlu0 %185
    %187 = vrot.lane.b32.xlu0 %v82, 1
    %v188 = vpop.permute.xlu0 %187
    %vm189 = vcmask 7168
    %v190 = vsel %vm189, %v184, %v186
    %v191 = vsel %vm189, %v186, %v188
    %v192 = vsel %vm189, %v188, %v181
    %v197 = vsel %vm189, %v181, %v184
    %s198 = scalar_lea.vmem [#allocation5], 96
    %v199 = vld [vmem:[%s198] sm:$0xff]
    %v200 = vld [vmem:[%s198 + $0x8] sm:$0xff]
    %v201 = vld [vmem:[%s198 + $0x10] sm:$0xff]
    %v202 = vld [vmem:[%s198 + $0x18] sm:$0xff]
    %vm203 = vcmp.gt.f32.partialorder %v199, 0.0
    %vm204 = vcmp.gt.f32.partialorder %v200, 0.0
    %vm205 = vcmp.gt.f32.partialorder %v201, 0.0
    %vm206 = vcmp.gt.f32.partialorder %v202, 0.0
    %v207 = vsel %vm203, %v197, 0.0
    %v208 = vsel %vm204, %v190, 0.0
    %v209 = vsel %vm205, %v191, 0.0
    %v210 = vsel %vm206, %v192, 0.0
    %211 = vrot.lane.b32.xlu0 %v80, 127
    %v212 = vpop.permute.xlu0 %211
    %213 = vrot.lane.b32.xlu0 %v81, 127
    %v214 = vpop.permute.xlu0 %213
    %215 = vrot.lane.b32.xlu0 %v82, 127
    %v216 = vpop.permute.xlu0 %215
    %217 = vrot.lane.b32.xlu0 %v83, 127
    %v218 = vpop.permute.xlu0 %217
    %vm219 = vcmask 1039360
    %v220 = vsel %vm219, %v212, %v214
    %v221 = vsel %vm219, %v214, %v216
    %v222 = vsel %vm219, %v216, %v218
    %v228 = vsel %vm219, %v218, %v212
    %s229 = scalar_lea.vmem [#allocation5], 160
    %v230 = vld [vmem:[%s229] sm:$0xff]
    %v231 = vld [vmem:[%s229 + $0x8] sm:$0xff]
    %v232 = vld [vmem:[%s229 + $0x10] sm:$0xff]
    %v233 = vld [vmem:[%s229 + $0x18] sm:$0xff]
    %vm234 = vcmp.gt.f32.partialorder %v230, 0.0
    %vm235 = vcmp.gt.f32.partialorder %v231, 0.0
    %vm236 = vcmp.gt.f32.partialorder %v232, 0.0
    %vm237 = vcmp.gt.f32.partialorder %v233, 0.0
    %v238 = vsel %vm234, %v220, 0.0
    %v239 = vsel %vm235, %v221, 0.0
    %v240 = vsel %vm236, %v222, 0.0
    %v241 = vsel %vm237, %v228, 0.0
    %242 = vrot.lane.b32.xlu0 %v80, 113
    %v243 = vpop.permute.xlu0 %242
    %244 = vrot.lane.b32.xlu0 %v81, 113
    %v245 = vpop.permute.xlu0 %244
    %246 = vrot.lane.b32.xlu0 %v82, 113
    %v247 = vpop.permute.xlu0 %246
    %248 = vrot.lane.b32.xlu0 %v83, 113
    %v249 = vpop.permute.xlu0 %248
    %vm250 = vcmask 924672
    %v251 = vsel %vm250, %v243, %v245
    %v252 = vsel %vm250, %v245, %v247
    %v253 = vsel %vm250, %v247, %v249
    %v259 = vsel %vm250, %v249, %v243
    %s260 = scalar_lea.vmem [#allocation5], 192
    %v261 = vld [vmem:[%s260] sm:$0xff]
    %v262 = vld [vmem:[%s260 + $0x8] sm:$0xff]
    %v263 = vld [vmem:[%s260 + $0x10] sm:$0xff]
    %v264 = vld [vmem:[%s260 + $0x18] sm:$0xff]
    %vm265 = vcmp.gt.f32.partialorder %v261, 0.0
    %vm266 = vcmp.gt.f32.partialorder %v262, 0.0
    %vm267 = vcmp.gt.f32.partialorder %v263, 0.0
    %vm268 = vcmp.gt.f32.partialorder %v264, 0.0
    %v269 = vsel %vm265, %v251, 0.0
    %v270 = vsel %vm266, %v252, 0.0
    %v271 = vsel %vm267, %v253, 0.0
    %v272 = vsel %vm268, %v259, 0.0
    %273 = vrot.lane.b32.xlu0 %v80, 112
    %v274 = vpop.permute.xlu0 %273
    %275 = vrot.lane.b32.xlu0 %v81, 112
    %v276 = vpop.permute.xlu0 %275
    %277 = vrot.lane.b32.xlu0 %v82, 112
    %v278 = vpop.permute.xlu0 %277
    %279 = vrot.lane.b32.xlu0 %v83, 112
    %v280 = vpop.permute.xlu0 %279
    %vm281 = vcmask 916480
    %v282 = vsel %vm281, %v274, %v276
    %v283 = vsel %vm281, %v276, %v278
    %v284 = vsel %vm281, %v278, %v280
    %v290 = vsel %vm281, %v280, %v274
    %s291 = scalar_lea.vmem [#allocation5], 224
    %v292 = vld [vmem:[%s291] sm:$0xff]
    %v293 = vld [vmem:[%s291 + $0x8] sm:$0xff]
    %v294 = vld [vmem:[%s291 + $0x10] sm:$0xff]
    %v295 = vld [vmem:[%s291 + $0x18] sm:$0xff]
    %vm296 = vcmp.gt.f32.partialorder %v292, 0.0
    %vm297 = vcmp.gt.f32.partialorder %v293, 0.0
    %vm298 = vcmp.gt.f32.partialorder %v294, 0.0
    %vm299 = vcmp.gt.f32.partialorder %v295, 0.0
    %v300 = vsel %vm296, %v282, 0.0
    %v301 = vsel %vm297, %v283, 0.0
    %v302 = vsel %vm298, %v284, 0.0
    %v303 = vsel %vm299, %v290, 0.0
    %304 = vrot.lane.b32.xlu0 %v80, 111
    %v305 = vpop.permute.xlu0 %304
    %306 = vrot.lane.b32.xlu0 %v81, 111
    %v307 = vpop.permute.xlu0 %306
    %308 = vrot.lane.b32.xlu0 %v82, 111
    %v309 = vpop.permute.xlu0 %308
    %310 = vrot.lane.b32.xlu0 %v83, 111
    %v311 = vpop.permute.xlu0 %310
    %vm312 = vcmask 908288
    %v313 = vsel %vm312, %v305, %v307
    %v314 = vsel %vm312, %v307, %v309
    %v315 = vsel %vm312, %v309, %v311
    %v321 = vsel %vm312, %v311, %v305
    %s322 = scalar_lea.vmem [#allocation5], 256
    %v323 = vld [vmem:[%s322] sm:$0xff]
    %v324 = vld [vmem:[%s322 + $0x8] sm:$0xff]
    %v325 = vld [vmem:[%s322 + $0x10] sm:$0xff]
    %v326 = vld [vmem:[%s322 + $0x18] sm:$0xff]
    %vm327 = vcmp.gt.f32.partialorder %v323, 0.0
    %vm328 = vcmp.gt.f32.partialorder %v324, 0.0
    %vm329 = vcmp.gt.f32.partialorder %v325, 0.0
    %vm330 = vcmp.gt.f32.partialorder %v326, 0.0
    %v331 = vsel %vm327, %v313, 0.0
    %v332 = vsel %vm328, %v314, 0.0
    %v333 = vsel %vm329, %v315, 0.0
    %v334 = vsel %vm330, %v321, 0.0
    %v335 = vpack.c.bf16 %v145, %v114
    %v336 = vpack.c.bf16 %v146, %v115
    %v337 = vpack.c.bf16 %v147, %v116
    %v338 = vpack.c.bf16 %v148, %v117
    %v339 = vpack.c.bf16 %v207, %v176
    %v340 = vpack.c.bf16 %v208, %v177
    %v341 = vpack.c.bf16 %v209, %v178
    %v342 = vpack.c.bf16 %v210, %v179
    %v343 = vpack.c.bf16 %v238, %v80
    %v344 = vpack.c.bf16 %v239, %v81
    %v345 = vpack.c.bf16 %v240, %v82
    %v346 = vpack.c.bf16 %v241, %v83
    %v347 = vpack.c.bf16 %v300, %v269
    %v348 = vpack.c.bf16 %v301, %v270
    %v349 = vpack.c.bf16 %v302, %v271
    %v350 = vpack.c.bf16 %v303, %v272
    %v351 = vpack.c.bf16 %v331, %v331
    %v352 = vpack.c.bf16 %v332, %v332
    %v353 = vpack.c.bf16 %v333, %v333
    %v354 = vpack.c.bf16 %v334, %v334
    %v355 = vld [vmem:[%s2] sm:$0xff]
    %357 = vset.pattern.permute.xlu0 0
    %358 = vperm.xlu0 %357, %v355
    %v359 = vpop.permute.xlu0 %358
    %vm361 = vcmask 588800
    %v363 = vsel %vm361, %v59, 0
    %vm365 = vcmask 1043456
    %v367 = vsel %vm365, %v351, 0
    %v370 = vsel %vm365, %v352, 0
    %v373 = vsel %vm365, %v353, 0
    %v376 = vsel %vm365, %v354, 0
    %378 = vmatpush.bf16.msra.mxu0 0
    %379 = vmatpush.bf16.msra.mxu0 0
    %380 = vmatpush.bf16.msra.mxu0 0
    %381 = vmatpush.bf16.msra.mxu0 %v367
    %382 = vmatpush.bf16.msra.mxu0 %v347
    %383 = vmatpush.bf16.msra.mxu0 %v343
    %384 = vmatpush.bf16.msra.mxu0 %v339
    %385 = vmatpush.bf16.msra.mxu0 %v335
    %386 = vmatmul.bf16.gmra.mxu0 %v363
    %v387 = vpop.f32.mrf.mxu0
    %v388 = vadd.f32 %v359, %v387
    %v389 = vpop.f32.mrf.mxu0
    %390 = vdwg.mxu0
    %391 = vmatpush.bf16.msra.mxu0 0
    %392 = vmatpush.bf16.msra.mxu0 0
    %393 = vmatpush.bf16.msra.mxu0 0
    %394 = vmatpush.bf16.msra.mxu0 %v370
    %395 = vmatpush.bf16.msra.mxu0 %v348
    %396 = vmatpush.bf16.msra.mxu0 %v344
    %397 = vmatpush.bf16.msra.mxu0 %v340
    %398 = vmatpush.bf16.msra.mxu0 %v336
    %399 = vmatmul.bf16.gmra.mxu0 %v363
    %v400 = vpop.f32.mrf.mxu0
    %v401 = vadd.f32 %v359, %v400
    %v402 = vpop.f32.mrf.mxu0
    %403 = vdwg.mxu0
    %404 = vmatpush.bf16.msra.mxu0 0
    %405 = vmatpush.bf16.msra.mxu0 0
    %406 = vmatpush.bf16.msra.mxu0 0
    %407 = vmatpush.bf16.msra.mxu0 %v373
    %408 = vmatpush.bf16.msra.mxu0 %v349
    %409 = vmatpush.bf16.msra.mxu0 %v345
    %410 = vmatpush.bf16.msra.mxu0 %v341
    %411 = vmatpush.bf16.msra.mxu0 %v337
    %412 = vmatmul.bf16.gmra.mxu0 %v363
    %v413 = vpop.f32.mrf.mxu0
    %v414 = vadd.f32 %v359, %v413
    %v415 = vpop.f32.mrf.mxu0
    %416 = vdwg.mxu0
    %417 = vmatpush.bf16.msra.mxu0 0
    %418 = vmatpush.bf16.msra.mxu0 0
    %419 = vmatpush.bf16.msra.mxu0 0
    %420 = vmatpush.bf16.msra.mxu0 %v376
    %421 = vmatpush.bf16.msra.mxu0 %v350
    %422 = vmatpush.bf16.msra.mxu0 %v346
    %423 = vmatpush.bf16.msra.mxu0 %v342
    %424 = vmatpush.bf16.msra.mxu0 %v338
    %425 = vmatmul.bf16.gmra.mxu0 %v363
    %v426 = vpop.f32.mrf.mxu0
    %v427 = vadd.f32 %v359, %v426
    %v428 = vpop.f32.mrf.mxu0
    %429 = vdwg.mxu0
    %v430 = vld [vmem:[%s3] sm:$0xf]
    %vm431 = vcmp.gt.f32.partialorder %v388, 0.0
    %vm432 = vcmp.gt.f32.partialorder %v401, 0.0
    %vm433 = vcmp.gt.f32.partialorder %v414, 0.0
    %vm434 = vcmp.gt.f32.partialorder %v427, 0.0
    %v435 = vmin.f32 %v388, 0.0
    %v436 = vmin.f32 %v401, 0.0
    %v437 = vmin.f32 %v414, 0.0
    %v438 = vmin.f32 %v427, 0.0
    %v439 = vmul.f32 %v435, 1.442695
    %v440 = vpow.pop %v439
    %v441 = vmul.f32 %v436, 1.442695
    %v442 = vpow.pop %v441
    %v443 = vmul.f32 %v437, 1.442695
    %v444 = vpow.pop %v443
    %v445 = vmul.f32 %v438, 1.442695
    %v446 = vpow.pop %v445
    %v447 = vsub.f32 %v440, 1.0
    %v448 = vsub.f32 %v442, 1.0
    %v449 = vsub.f32 %v444, 1.0
    %v450 = vsub.f32 %v446, 1.0
    %v451 = vsel %vm431, %v388, %v447
    %v452 = vsel %vm432, %v401, %v448
    %v453 = vsel %vm433, %v414, %v449
    %v454 = vsel %vm434, %v427, %v450
    %456 = vrot.lane.b32.xlu0 %v454, 17
    %v457 = vpop.permute.xlu0 %456
    %462 = vrot.lane.b32.xlu0 %v451, 17
    %v463 = vpop.permute.xlu0 %462
    %464 = vrot.lane.b32.xlu0 %v452, 17
    %v465 = vpop.permute.xlu0 %464
    %466 = vrot.lane.b32.xlu0 %v453, 17
    %v467 = vpop.permute.xlu0 %466
    %v468 = vsel %vm97, %v463, %v465
    %v469 = vsel %vm97, %v465, %v467
    %v470 = vsel %vm97, %v467, %v457
    %v475 = vsel %vm97, %v457, %v463
    %v476 = vsel %vm110, %v475, 0.0
    %v477 = vsel %vm111, %v468, 0.0
    %v478 = vsel %vm112, %v469, 0.0
    %v479 = vsel %vm113, %v470, 0.0
    %480 = vrot.lane.b32.xlu0 %v454, 16
    %v481 = vpop.permute.xlu0 %480
    %483 = vrot.lane.b32.xlu0 %v451, 16
    %v484 = vpop.permute.xlu0 %483
    %485 = vrot.lane.b32.xlu0 %v452, 16
    %v486 = vpop.permute.xlu0 %485
    %487 = vrot.lane.b32.xlu0 %v453, 16
    %v488 = vpop.permute.xlu0 %487
    %v489 = vsel %vm127, %v484, %v486
    %v490 = vsel %vm127, %v486, %v488
    %v491 = vsel %vm127, %v488, %v481
    %v496 = vsel %vm127, %v481, %v484
    %v497 = vsel %vm141, %v496, 0.0
    %v498 = vsel %vm142, %v489, 0.0
    %v499 = vsel %vm143, %v490, 0.0
    %v500 = vsel %vm144, %v491, 0.0
    %501 = vrot.lane.b32.xlu0 %v454, 15
    %v502 = vpop.permute.xlu0 %501
    %504 = vrot.lane.b32.xlu0 %v451, 15
    %v505 = vpop.permute.xlu0 %504
    %506 = vrot.lane.b32.xlu0 %v452, 15
    %v507 = vpop.permute.xlu0 %506
    %508 = vrot.lane.b32.xlu0 %v453, 15
    %v509 = vpop.permute.xlu0 %508
    %v510 = vsel %vm158, %v505, %v507
    %v511 = vsel %vm158, %v507, %v509
    %v512 = vsel %vm158, %v509, %v502
    %v517 = vsel %vm158, %v502, %v505
    %v518 = vsel %vm172, %v517, 0.0
    %v519 = vsel %vm173, %v510, 0.0
    %v520 = vsel %vm174, %v511, 0.0
    %v521 = vsel %vm175, %v512, 0.0
    %522 = vrot.lane.b32.xlu0 %v454, 1
    %v523 = vpop.permute.xlu0 %522
    %525 = vrot.lane.b32.xlu0 %v451, 1
    %v526 = vpop.permute.xlu0 %525
    %527 = vrot.lane.b32.xlu0 %v452, 1
    %v528 = vpop.permute.xlu0 %527
    %529 = vrot.lane.b32.xlu0 %v453, 1
    %v530 = vpop.permute.xlu0 %529
    %v531 = vsel %vm189, %v526, %v528
    %v532 = vsel %vm189, %v528, %v530
    %v533 = vsel %vm189, %v530, %v523
    %v538 = vsel %vm189, %v523, %v526
    %v539 = vsel %vm203, %v538, 0.0
    %v540 = vsel %vm204, %v531, 0.0
    %v541 = vsel %vm205, %v532, 0.0
    %v542 = vsel %vm206, %v533, 0.0
    %543 = vrot.lane.b32.xlu0 %v451, 127
    %v544 = vpop.permute.xlu0 %543
    %545 = vrot.lane.b32.xlu0 %v452, 127
    %v546 = vpop.permute.xlu0 %545
    %547 = vrot.lane.b32.xlu0 %v453, 127
    %v548 = vpop.permute.xlu0 %547
    %549 = vrot.lane.b32.xlu0 %v454, 127
    %v550 = vpop.permute.xlu0 %549
    %v551 = vsel %vm219, %v544, %v546
    %v552 = vsel %vm219, %v546, %v548
    %v553 = vsel %vm219, %v548, %v550
    %v559 = vsel %vm219, %v550, %v544
    %v560 = vsel %vm234, %v551, 0.0
    %v561 = vsel %vm235, %v552, 0.0
    %v562 = vsel %vm236, %v553, 0.0
    %v563 = vsel %vm237, %v559, 0.0
    %564 = vrot.lane.b32.xlu0 %v451, 113
    %v565 = vpop.permute.xlu0 %564
    %566 = vrot.lane.b32.xlu0 %v452, 113
    %v567 = vpop.permute.xlu0 %566
    %568 = vrot.lane.b32.xlu0 %v453, 113
    %v569 = vpop.permute.xlu0 %568
    %570 = vrot.lane.b32.xlu0 %v454, 113
    %v571 = vpop.permute.xlu0 %570
    %v572 = vsel %vm250, %v565, %v567
    %v573 = vsel %vm250, %v567, %v569
    %v574 = vsel %vm250, %v569, %v571
    %v580 = vsel %vm250, %v571, %v565
    %v581 = vsel %vm265, %v572, 0.0
    %v582 = vsel %vm266, %v573, 0.0
    %v583 = vsel %vm267, %v574, 0.0
    %v584 = vsel %vm268, %v580, 0.0
    %585 = vrot.lane.b32.xlu0 %v451, 112
    %v586 = vpop.permute.xlu0 %585
    %587 = vrot.lane.b32.xlu0 %v452, 112
    %v588 = vpop.permute.xlu0 %587
    %589 = vrot.lane.b32.xlu0 %v453, 112
    %v590 = vpop.permute.xlu0 %589
    %591 = vrot.lane.b32.xlu0 %v454, 112
    %v592 = vpop.permute.xlu0 %591
    %v593 = vsel %vm281, %v586, %v588
    %v594 = vsel %vm281, %v588, %v590
    %v595 = vsel %vm281, %v590, %v592
    %v601 = vsel %vm281, %v592, %v586
    %v602 = vsel %vm296, %v593, 0.0
    %v603 = vsel %vm297, %v594, 0.0
    %v604 = vsel %vm298, %v595, 0.0
    %v605 = vsel %vm299, %v601, 0.0
    %606 = vrot.lane.b32.xlu0 %v451, 111
    %v607 = vpop.permute.xlu0 %606
    %608 = vrot.lane.b32.xlu0 %v452, 111
    %v609 = vpop.permute.xlu0 %608
    %610 = vrot.lane.b32.xlu0 %v453, 111
    %v611 = vpop.permute.xlu0 %610
    %612 = vrot.lane.b32.xlu0 %v454, 111
    %v613 = vpop.permute.xlu0 %612
    %v614 = vsel %vm312, %v607, %v609
    %v615 = vsel %vm312, %v609, %v611
    %v616 = vsel %vm312, %v611, %v613
    %v622 = vsel %vm312, %v613, %v607
    %v623 = vsel %vm327, %v614, 0.0
    %v624 = vsel %vm328, %v615, 0.0
    %v625 = vsel %vm329, %v616, 0.0
    %v626 = vsel %vm330, %v622, 0.0
    %v627 = vpack.c.bf16 %v497, %v476
    %v628 = vpack.c.bf16 %v498, %v477
    %v629 = vpack.c.bf16 %v499, %v478
    %v630 = vpack.c.bf16 %v500, %v479
    %v631 = vpack.c.bf16 %v539, %v518
    %v632 = vpack.c.bf16 %v540, %v519
    %v633 = vpack.c.bf16 %v541, %v520
    %v634 = vpack.c.bf16 %v542, %v521
    %v635 = vpack.c.bf16 %v560, %v451
    %v636 = vpack.c.bf16 %v561, %v452
    %v637 = vpack.c.bf16 %v562, %v453
    %v638 = vpack.c.bf16 %v563, %v454
    %v639 = vpack.c.bf16 %v602, %v581
    %v640 = vpack.c.bf16 %v603, %v582
    %v641 = vpack.c.bf16 %v604, %v583
    %v642 = vpack.c.bf16 %v605, %v584
    %v643 = vpack.c.bf16 %v623, %v623
    %v644 = vpack.c.bf16 %v624, %v624
    %v645 = vpack.c.bf16 %v625, %v625
    %v646 = vpack.c.bf16 %v626, %v626
    %v647 = vld [vmem:[%s4] sm:$0xff]
    %649 = vset.pattern.permute.xlu0 0
    %650 = vperm.xlu0 %649, %v647
    %v651 = vpop.permute.xlu0 %650
    %v654 = vsel %vm361, %v430, 0
    %v657 = vsel %vm365, %v643, 0
    %v660 = vsel %vm365, %v644, 0
    %v663 = vsel %vm365, %v645, 0
    %v666 = vsel %vm365, %v646, 0
    %668 = vmatpush.bf16.msra.mxu0 0
    %669 = vmatpush.bf16.msra.mxu0 0
    %670 = vmatpush.bf16.msra.mxu0 0
    %671 = vmatpush.bf16.msra.mxu0 %v657
    %672 = vmatpush.bf16.msra.mxu0 %v639
    %673 = vmatpush.bf16.msra.mxu0 %v635
    %674 = vmatpush.bf16.msra.mxu0 %v631
    %675 = vmatpush.bf16.msra.mxu0 %v627
    %676 = vmatmul.bf16.gmra.mxu0 %v654
    %v677 = vpop.f32.mrf.mxu0
    %v678 = vadd.f32 %v651, %v677
    %v679 = vpop.f32.mrf.mxu0
    %680 = vdwg.mxu0
    %681 = vmatpush.bf16.msra.mxu0 0
    %682 = vmatpush.bf16.msra.mxu0 0
    %683 = vmatpush.bf16.msra.mxu0 0
    %684 = vmatpush.bf16.msra.mxu0 %v660
    %685 = vmatpush.bf16.msra.mxu0 %v640
    %686 = vmatpush.bf16.msra.mxu0 %v636
    %687 = vmatpush.bf16.msra.mxu0 %v632
    %688 = vmatpush.bf16.msra.mxu0 %v628
    %689 = vmatmul.bf16.gmra.mxu0 %v654
    %v690 = vpop.f32.mrf.mxu0
    %v691 = vadd.f32 %v651, %v690
    %v692 = vpop.f32.mrf.mxu0
    %693 = vdwg.mxu0
    %694 = vmatpush.bf16.msra.mxu0 0
    %695 = vmatpush.bf16.msra.mxu0 0
    %696 = vmatpush.bf16.msra.mxu0 0
    %697 = vmatpush.bf16.msra.mxu0 %v663
    %698 = vmatpush.bf16.msra.mxu0 %v641
    %699 = vmatpush.bf16.msra.mxu0 %v637
    %700 = vmatpush.bf16.msra.mxu0 %v633
    %701 = vmatpush.bf16.msra.mxu0 %v629
    %702 = vmatmul.bf16.gmra.mxu0 %v654
    %v703 = vpop.f32.mrf.mxu0
    %v704 = vadd.f32 %v651, %v703
    %v705 = vpop.f32.mrf.mxu0
    %706 = vdwg.mxu0
    %707 = vmatpush.bf16.msra.mxu0 0
    %708 = vmatpush.bf16.msra.mxu0 0
    %709 = vmatpush.bf16.msra.mxu0 0
    %710 = vmatpush.bf16.msra.mxu0 %v666
    %711 = vmatpush.bf16.msra.mxu0 %v642
    %712 = vmatpush.bf16.msra.mxu0 %v638
    %713 = vmatpush.bf16.msra.mxu0 %v634
    %714 = vmatpush.bf16.msra.mxu0 %v630
    %715 = vmatmul.bf16.gmra.mxu0 %v654
    %v716 = vpop.f32.mrf.mxu0
    %v717 = vadd.f32 %v651, %v716
    %v718 = vpop.f32.mrf.mxu0
    %719 = vdwg.mxu0
    %v720 = vxor.u32 %v678, 2147483648
    %v721 = vxor.u32 %v691, 2147483648
    %v722 = vxor.u32 %v704, 2147483648
    %v723 = vxor.u32 %v717, 2147483648
    %v724 = vmul.f32 %v720, 1.442695
    %v725 = vpow.pop %v724
    %v726 = vmul.f32 %v721, 1.442695
    %v727 = vpow.pop %v726
    %v728 = vmul.f32 %v722, 1.442695
    %v729 = vpow.pop %v728
    %v730 = vmul.f32 %v723, 1.442695
    %v731 = vpow.pop %v730
    %v732 = vadd.f32 %v725, 1.0
    %v733 = vadd.f32 %v727, 1.0
    %v734 = vadd.f32 %v729, 1.0
    %v735 = vadd.f32 %v731, 1.0
    %v736 = vrcp.pop %v732
    %v737 = vmul.f32 %v732, %v736
    %v738 = vsub.f32 1.0, %v737
    %v739 = vmul.f32 %v736, %v738
    %v740 = vadd.f32 %v736, %v739
    %vm741 = vweird.f32 %v732
    %vm742 = vweird.f32 %v736
    %vm743 = vmor %vm741, %vm742
    %v744 = vsel %vm743, %v736, %v740
    %v745 = vand.u32 2147483647, %v732
    %vm746 = vcmp.eq.f32.partialorder %v745, 8.507059e+37
    %v747 = vand.u32 %v732, 2147483648
    %v748 = vor.u32 1.1754944e-38, %v747
    %v749 = vsel %vm746, %v748, %v744
    %v750 = vmul.f32 1.0, %v749
    %v751 = vrcp.pop %v733
    %v752 = vmul.f32 %v733, %v751
    %v753 = vsub.f32 1.0, %v752
    %v754 = vmul.f32 %v751, %v753
    %v755 = vadd.f32 %v751, %v754
    %vm756 = vweird.f32 %v733
    %vm757 = vweird.f32 %v751
    %vm758 = vmor %vm756, %vm757
    %v759 = vsel %vm758, %v751, %v755
    %v760 = vand.u32 2147483647, %v733
    %vm761 = vcmp.eq.f32.partialorder %v760, 8.507059e+37
    %v762 = vand.u32 %v733, 2147483648
    %v763 = vor.u32 1.1754944e-38, %v762
    %v764 = vsel %vm761, %v763, %v759
    %v765 = vmul.f32 1.0, %v764
    %v766 = vrcp.pop %v734
    %v767 = vmul.f32 %v734, %v766
    %v768 = vsub.f32 1.0, %v767
    %v769 = vmul.f32 %v766, %v768
    %v770 = vadd.f32 %v766, %v769
    %vm771 = vweird.f32 %v734
    %vm772 = vweird.f32 %v766
    %vm773 = vmor %vm771, %vm772
    %v774 = vsel %vm773, %v766, %v770
    %v775 = vand.u32 2147483647, %v734
    %vm776 = vcmp.eq.f32.partialorder %v775, 8.507059e+37
    %v777 = vand.u32 %v734, 2147483648
    %v778 = vor.u32 1.1754944e-38, %v777
    %v779 = vsel %vm776, %v778, %v774
    %v780 = vmul.f32 1.0, %v779
    %v781 = vrcp.pop %v735
    %v782 = vmul.f32 %v735, %v781
    %v783 = vsub.f32 1.0, %v782
    %v784 = vmul.f32 %v781, %v783
    %v785 = vadd.f32 %v781, %v784
    %vm786 = vweird.f32 %v735
    %vm787 = vweird.f32 %v781
    %vm788 = vmor %vm786, %vm787
    %v789 = vsel %vm788, %v781, %v785
    %v790 = vand.u32 2147483647, %v735
    %vm791 = vcmp.eq.f32.partialorder %v790, 8.507059e+37
    %v792 = vand.u32 %v735, 2147483648
    %v793 = vor.u32 1.1754944e-38, %v792
    %v794 = vsel %vm791, %v793, %v789
    %v795 = vmul.f32 1.0, %v794
    %v800 = vrot.slane %v750, 4
    %v801 = vrot.slane %v765, 4
    %v802 = vrot.slane %v780, 4
    %v803 = vrot.slane %v795, 4
    %v808 = vmul.f32 %v678, %v800
    %v809 = vmul.f32 %v691, %v801
    %v810 = vmul.f32 %v704, %v802
    %v811 = vmul.f32 %v717, %v803
    %v812 = vadd.f32 %v808, %v55
    %v813 = vadd.f32 %v809, %v56
    %v814 = vadd.f32 %v810, %v57
    %v815 = vadd.f32 %v811, %v58
    %v820 = vrot.slane %v813, 4
    %v821 = vrot.slane %v815, 4
    %v822 = vsel %vm365, %v812, %v820
    %v823 = vsel %vm365, %v814, %v821
    %826 = vst [vmem:[#allocation7] sm:$0xff] %v822
    %827 = vst [vmem:[#allocation7 + $0x8] sm:$0xff] %v823
    // Predicated region
    $region34: #{tpu_custom_call.1} parent=1 // pred_check
      _
    $region35: #{tpu_custom_call.1} parent=1 // pred_check_branch
      %829 = sbr.rel (0) target = $region37
    $region36: #{tpu_custom_call.1} parent=1 // pred_region
      %831 = vsyncadd [#allocation4], 0
      %s833 = sshll.u32 [#allocation7], 4
      %s834 = int_to_ptr.vmem [resolvable:$true] %s833
      %s835 = sshll.u32 %s6, 4
      %s836 = int_to_ptr.hbm [resolvable:$true] %s835
      %838 = dma.vmem_to_hbm [thread:$0]  %s834, 256, %s836, [#allocation4]
    $region37: #{tpu_custom_call.1} parent=1 // pred_fallthru
      _
    // Predicated region
    $region38: #{tpu_custom_call.1} parent=1 // pred_check
      _
    $region39: #{tpu_custom_call.1} parent=1 // pred_check_branch
      %840 = sbr.rel (0) target = $region41
    $region40: #{tpu_custom_call.1} parent=1 // pred_region
      %842 = dma.done [#allocation4], 256
    $region41: #{tpu_custom_call.1} parent=1 // pred_fallthru
      _
    %843 = vsyncpa [#allocation3], 1
    %844 = vsyncpa [#allocation6], 1
    %845 = vsyncpa [#allocation4], 1

</llo_original>
